<compile_context>
chip_gen: v7x
topology: tpu7x:2x2x1
jax: 0.10.0
libtpu: 0.0.40
codegen_flags: <defaults>
</compile_context>

<pallas_src>
import functools

import jax
import jax.numpy as jnp
from jax.experimental import pallas as pl
from jax.experimental.pallas import tpu as pltpu

HIDDEN = 100
LANE = 128


def _round_up(n, m):
    return ((n + m - 1) // m) * m


def _mlp_kernel(x_ref, w1_ref, b1_ref, w2_ref, b2_ref, w3_ref, b3_ref, o_ref):
    # x stays f32 in HBM; cast to bf16 in-kernel (avoids a separate wrapper-side
    # cast pass over x in HBM).
    x = x_ref[...].astype(w1_ref.dtype)                      # (TB, D_in) bf16

    # fc1 + ReLU (bf16 MXU inputs, f32 accumulate; epilogue stays f32 -- v5e VPU
    # has no bf16 path).
    h1 = jnp.dot(x, w1_ref[...], preferred_element_type=jnp.float32)
    h1 = jnp.maximum(h1 + b1_ref[...], 0.0)

    # fc2 + ReLU
    h2 = jnp.dot(h1.astype(w2_ref.dtype), w2_ref[...],
                 preferred_element_type=jnp.float32)
    h2 = jnp.maximum(h2 + b2_ref[...], 0.0)

    # fc3 + ReLU -- narrow (out_features-wide) result, stored directly.
    h3 = jnp.dot(h2.astype(w3_ref.dtype), w3_ref[...],
                 preferred_element_type=jnp.float32)
    h3 = jnp.maximum(h3 + b3_ref[...], 0.0)

    o_ref[...] = h3.astype(o_ref.dtype)


@functools.partial(jax.jit, static_argnames=("block_b",))
def mlp_forward(x, w1, b1, w2, b2, w3, b3, *, block_b=4096):
    """x: (B, D_in) f32. Padded params from `prepare_params`.

    Returns (B, out_features) f32.
    """
    B, d_in = x.shape
    out_f = w3.shape[1]

    # --- batch tile selection ---------------------------------------------
    # Per-row VMEM bytes: double-buffered f32 x tile + double-buffered f32 out
    # tile + f32/bf16 intermediates (generous).
    bytes_per_row = 2 * d_in * 4 + 2 * out_f * 4 + 4 * LANE * 4
    tile_budget = 24 << 20                       # keeps us safe on every gen
    tb_cap = max(8, (tile_budget // bytes_per_row) // 8 * 8)

    tb = min(block_b, tb_cap, _round_up(B, 8))
    tb = max(8, (tb // 8) * 8)                   # (8,128) rule: multiple of 8

    # v7x: if the whole batch fits in one tile, split it so the grid has >= 2
    # steps and "parallel" actually feeds both TensorCores.
    if B > 8 and _round_up(B, 8) <= tb:
        tb = max(8, _round_up(pl.cdiv(B, 2), 8))

    b_pad = _round_up(B, tb)
    if b_pad != B:
        # TODO(synk): replace this pad with an in-kernel tail-row mask to avoid
        # the extra HBM pass for very large ragged batches.
        x = jnp.pad(x, ((0, b_pad - B), (0, 0)))

    # --- explicit scoped-VMEM budget (v5e default is only 16 MiB scoped) ----
    weight_bytes = sum(int(a.size) * a.dtype.itemsize
                       for a in (w1, b1, w2, b2, w3, b3))
    tile_bytes = tb * bytes_per_row
    vmem_limit = int(min(48 << 20,                      # < v7x 64 MiB physical
                         max(16 << 20, tile_bytes + weight_bytes + (8 << 20))))

    out = pl.pallas_call(
        _mlp_kernel,
        out_shape=jax.ShapeDtypeStruct((b_pad, out_f), jnp.float32),
        grid=(b_pad // tb,),
        in_specs=[
            pl.BlockSpec((tb, d_in), lambda i: (i, 0)),     # x: streamed (f32)
            pl.BlockSpec(w1.shape, lambda i: (0, 0)),       # weights/biases:
            pl.BlockSpec(b1.shape, lambda i: (0, 0)),       #   VMEM-resident
            pl.BlockSpec(w2.shape, lambda i: (0, 0)),
            pl.BlockSpec(b2.shape, lambda i: (0, 0)),
            pl.BlockSpec(w3.shape, lambda i: (0, 0)),
            pl.BlockSpec(b3.shape, lambda i: (0, 0)),
        ],
        out_specs=pl.BlockSpec((tb, out_f), lambda i: (i, 0)),
        compiler_params=pltpu.CompilerParams(
            dimension_semantics=("parallel",),   # v7x: shard batch over 2 TCs
            vmem_limit_bytes=vmem_limit,
        ),
    )(x, w1, b1, w2, b2, w3, b3)

    return out if b_pad == B else out[:B]


def init_params(key, input_shape, output_shape, hidden=HIDDEN):
    """Deterministic init mimicking nn.Linear's U(-1/sqrt(fan_in), 1/sqrt(fan_in)).

    Weights stored pre-transposed as (fan_in, fan_out); biases as (1, fan_out).
    """
    ks = jax.random.split(key, 6)

    def linear(kw, kb, fan_in, fan_out):
        bound = 1.0 / jnp.sqrt(fan_in)
        w = jax.random.uniform(kw, (fan_in, fan_out), jnp.float32, -bound, bound)
        b = jax.random.uniform(kb, (1, fan_out), jnp.float32, -bound, bound)
        return w, b

    w1, b1 = linear(ks[0], ks[1], input_shape, hidden)
    w2, b2 = linear(ks[2], ks[3], hidden, hidden)
    w3, b3 = linear(ks[4], ks[5], hidden, output_shape)
    return w1, b1, w2, b2, w3, b3


def prepare_params(params, compute_dtype=jnp.bfloat16):
    """Zero-pad the hidden dim to 128 lanes; weights compute_dtype, biases f32.

    The output dim of fc3 is left unpadded so the kernel writes exactly
    (B, out_features) -- no padded output slab.
    Note: bf16 weights diverge slightly from exact f32 nn.Linear math.
    """
    w1, b1, w2, b2, w3, b3 = params
    d_in, h = w1.shape
    d_out = w3.shape[1]
    hp = _round_up(h, LANE)

    w1p = jnp.zeros((d_in, hp), compute_dtype).at[:, :h].set(w1.astype(compute_dtype))
    b1p = jnp.zeros((1, hp), jnp.float32).at[:, :h].set(b1)
    w2p = jnp.zeros((hp, hp), compute_dtype).at[:h, :h].set(w2.astype(compute_dtype))
    b2p = jnp.zeros((1, hp), jnp.float32).at[:, :h].set(b2)
    w3p = jnp.zeros((hp, d_out), compute_dtype).at[:h, :].set(w3.astype(compute_dtype))
    b3p = b3.astype(jnp.float32).reshape(1, d_out)
    return w1p, b1p, w2p, b2p, w3p, b3p


def _reference_matched_precision(x, params, compute_dtype=jnp.bfloat16):
    """Plain-JAX reference with the same bf16-input / f32-accumulate math."""
    w1, b1, w2, b2, w3, b3 = params

    def layer(a, w, b):
        y = jnp.dot(a.astype(compute_dtype), w.astype(compute_dtype),
                    preferred_element_type=jnp.float32)
        return jnp.maximum(y + b, 0.0)

    h = layer(x, w1, b1)
    h = layer(h, w2, b2)
    return layer(h, w3, b3)


def _reference_f32(x, params):
    w1, b1, w2, b2, w3, b3 = params
    h = jnp.maximum(x @ w1 + b1, 0.0)
    h = jnp.maximum(h @ w2 + b2, 0.0)
    return jnp.maximum(h @ w3 + b3, 0.0)


if __name__ == "__main__":
    key = jax.random.PRNGKey(0)
    k_x, k_p = jax.random.split(key)

    batch = 24
    input_shape = 32
    output_shape = 16

    x = jax.random.normal(k_x, (batch, input_shape), jnp.float32)
    params = init_params(k_p, input_shape, output_shape)
    padded = prepare_params(params)

    # Small block_b so the demo exercises a multi-step batch grid (grid=(3,)).
    out = mlp_forward(x, *padded, block_b=8)
    out = jax.block_until_ready(out)
    assert out.shape == (batch, output_shape)

    # Auto-sized tiling path (exercises the v7x >=2-step split + row padding).
    out_auto = jax.block_until_ready(mlp_forward(x, *padded))
    assert out_auto.shape == (batch, output_shape)
    assert jnp.allclose(out, out_auto, atol=1e-5, rtol=1e-5)

    # Check against a matched-precision (bf16-input, f32-accumulate) reference.
    ref_bf16 = _reference_matched_precision(x, params)
    assert jnp.allclose(out, ref_bf16, atol=2e-4, rtol=2e-4)

    # Loose sanity check against the exact f32 PyTorch-equivalent math.
    ref_f32 = _reference_f32(x, params)
    assert jnp.allclose(out, ref_f32, atol=1e-1, rtol=1e-1)

    print("KERNEL_OK")
</pallas_src>

<mosaic_0001>
module attributes {stable_mosaic.version = 11 : i64} {
  func.func @_mlp_kernel(%arg0: i32, %arg1: memref<8x32xf32, #tpu.memory_space<vmem>>, %arg2: memref<32x128xbf16, #tpu.memory_space<vmem>>, %arg3: memref<1x128xf32, #tpu.memory_space<vmem>>, %arg4: memref<128x128xbf16, #tpu.memory_space<vmem>>, %arg5: memref<1x128xf32, #tpu.memory_space<vmem>>, %arg6: memref<128x16xbf16, #tpu.memory_space<vmem>>, %arg7: memref<1x16xf32, #tpu.memory_space<vmem>>, %arg8: memref<8x16xf32, #tpu.memory_space<vmem>>) attributes {dimension_semantics = [#tpu.dimension_semantics<parallel>], iteration_bounds = array<i64: 3>, scalar_prefetch = 0 : i64, scratch_operands = 0 : i64, tpu.core_type = #tpu.core_type<tc>, window_params = [{transform_indices = @transform_0, window_bounds = array<i64: 8, 32>}, {pipeline_mode = #tpu.pipeline_mode<synchronous>, transform_indices = @transform_1, window_bounds = array<i64: 32, 128>}, {pipeline_mode = #tpu.pipeline_mode<synchronous>, transform_indices = @transform_2, window_bounds = array<i64: 1, 128>}, {pipeline_mode = #tpu.pipeline_mode<synchronous>, transform_indices = @transform_3, window_bounds = array<i64: 128, 128>}, {pipeline_mode = #tpu.pipeline_mode<synchronous>, transform_indices = @transform_4, window_bounds = array<i64: 1, 128>}, {pipeline_mode = #tpu.pipeline_mode<synchronous>, transform_indices = @transform_5, window_bounds = array<i64: 128, 16>}, {pipeline_mode = #tpu.pipeline_mode<synchronous>, transform_indices = @transform_6, window_bounds = array<i64: 1, 16>}, {transform_indices = @transform_7, window_bounds = array<i64: 8, 16>}]} {
    %c0 = arith.constant 0 : index
    %c0_0 = arith.constant 0 : index
    %0 = vector.load %arg1[%c0, %c0_0] : memref<8x32xf32, #tpu.memory_space<vmem>>, vector<8x32xf32>
    %1 = arith.truncf %0 : vector<8x32xf32> to vector<8x32xbf16>
    %c0_1 = arith.constant 0 : index
    %c0_2 = arith.constant 0 : index
    %2 = vector.load %arg2[%c0_1, %c0_2] : memref<32x128xbf16, #tpu.memory_space<vmem>>, vector<32x128xbf16>
    %cst = arith.constant dense<0.000000e+00> : vector<8x128xf32>
    %3 = tpu.matmul %1, %2, %cst {dimension_numbers = #tpu.dot_dimension_numbers<[1], [0], [0], [1], [0, 0, 1, 1], [], []>} : vector<8x32xbf16>, vector<32x128xbf16>, vector<8x128xf32> -> vector<8x128xf32>
    %c0_3 = arith.constant 0 : index
    %c0_4 = arith.constant 0 : index
    %4 = vector.load %arg3[%c0_3, %c0_4] : memref<1x128xf32, #tpu.memory_space<vmem>>, vector<1x128xf32>
    %5 = vector.broadcast %4 : vector<1x128xf32> to vector<8x128xf32>
    %6 = arith.addf %3, %5 : vector<8x128xf32>
    %cst_5 = arith.constant 0.000000e+00 : f32
    %7 = vector.broadcast %cst_5 : f32 to vector<8x128xf32>
    %8 = arith.maximumf %6, %7 : vector<8x128xf32>
    %9 = arith.truncf %8 : vector<8x128xf32> to vector<8x128xbf16>
    %c0_6 = arith.constant 0 : index
    %c0_7 = arith.constant 0 : index
    %10 = vector.load %arg4[%c0_6, %c0_7] : memref<128x128xbf16, #tpu.memory_space<vmem>>, vector<128x128xbf16>
    %cst_8 = arith.constant dense<0.000000e+00> : vector<8x128xf32>
    %11 = tpu.matmul %9, %10, %cst_8 {dimension_numbers = #tpu.dot_dimension_numbers<[1], [0], [0], [1], [0, 0, 1, 1], [], []>} : vector<8x128xbf16>, vector<128x128xbf16>, vector<8x128xf32> -> vector<8x128xf32>
    %c0_9 = arith.constant 0 : index
    %c0_10 = arith.constant 0 : index
    %12 = vector.load %arg5[%c0_9, %c0_10] : memref<1x128xf32, #tpu.memory_space<vmem>>, vector<1x128xf32>
    %13 = vector.broadcast %12 : vector<1x128xf32> to vector<8x128xf32>
    %14 = arith.addf %11, %13 : vector<8x128xf32>
    %cst_11 = arith.constant 0.000000e+00 : f32
    %15 = vector.broadcast %cst_11 : f32 to vector<8x128xf32>
    %16 = arith.maximumf %14, %15 : vector<8x128xf32>
    %17 = arith.truncf %16 : vector<8x128xf32> to vector<8x128xbf16>
    %c0_12 = arith.constant 0 : index
    %c0_13 = arith.constant 0 : index
    %18 = vector.load %arg6[%c0_12, %c0_13] : memref<128x16xbf16, #tpu.memory_space<vmem>>, vector<128x16xbf16>
    %cst_14 = arith.constant dense<0.000000e+00> : vector<8x16xf32>
    %19 = tpu.matmul %17, %18, %cst_14 {dimension_numbers = #tpu.dot_dimension_numbers<[1], [0], [0], [1], [0, 0, 1, 1], [], []>} : vector<8x128xbf16>, vector<128x16xbf16>, vector<8x16xf32> -> vector<8x16xf32>
    %c0_15 = arith.constant 0 : index
    %c0_16 = arith.constant 0 : index
    %20 = vector.load %arg7[%c0_15, %c0_16] : memref<1x16xf32, #tpu.memory_space<vmem>>, vector<1x16xf32>
    %21 = vector.broadcast %20 : vector<1x16xf32> to vector<8x16xf32>
    %22 = arith.addf %19, %21 : vector<8x16xf32>
    %cst_17 = arith.constant 0.000000e+00 : f32
    %23 = vector.broadcast %cst_17 : f32 to vector<8x16xf32>
    %24 = arith.maximumf %22, %23 : vector<8x16xf32>
    %c0_18 = arith.constant 0 : index
    %c0_19 = arith.constant 0 : index
    %25 = vector.load %arg8[%c0_18, %c0_19] : memref<8x16xf32, #tpu.memory_space<vmem>>, vector<8x16xf32>
    tpu.vector_store %arg8[%c0_18, %c0_19], %24 {strides = array<i32>} : memref<8x16xf32, #tpu.memory_space<vmem>>, vector<8x16xf32>,
    return
  }
  func.func @transform_0(%arg0: i32) -> (i32, i32) {
    %c0_i32 = arith.constant 0 : i32
    %c0_i32_0 = arith.constant 0 : i32
    return %arg0, %c0_i32 : i32, i32
  }
  func.func @transform_1(%arg0: i32) -> (i32, i32) {
    %c0_i32 = arith.constant 0 : i32
    %c0_i32_0 = arith.constant 0 : i32
    %c0_i32_1 = arith.constant 0 : i32
    return %c0_i32, %c0_i32_0 : i32, i32
  }
  func.func @transform_2(%arg0: i32) -> (i32, i32) {
    %c0_i32 = arith.constant 0 : i32
    %c0_i32_0 = arith.constant 0 : i32
    %c0_i32_1 = arith.constant 0 : i32
    return %c0_i32, %c0_i32_0 : i32, i32
  }
  func.func @transform_3(%arg0: i32) -> (i32, i32) {
    %c0_i32 = arith.constant 0 : i32
    %c0_i32_0 = arith.constant 0 : i32
    %c0_i32_1 = arith.constant 0 : i32
    return %c0_i32, %c0_i32_0 : i32, i32
  }
  func.func @transform_4(%arg0: i32) -> (i32, i32) {
    %c0_i32 = arith.constant 0 : i32
    %c0_i32_0 = arith.constant 0 : i32
    %c0_i32_1 = arith.constant 0 : i32
    return %c0_i32, %c0_i32_0 : i32, i32
  }
  func.func @transform_5(%arg0: i32) -> (i32, i32) {
    %c0_i32 = arith.constant 0 : i32
    %c0_i32_0 = arith.constant 0 : i32
    %c0_i32_1 = arith.constant 0 : i32
    return %c0_i32, %c0_i32_0 : i32, i32
  }
  func.func @transform_6(%arg0: i32) -> (i32, i32) {
    %c0_i32 = arith.constant 0 : i32
    %c0_i32_0 = arith.constant 0 : i32
    %c0_i32_1 = arith.constant 0 : i32
    return %c0_i32, %c0_i32_0 : i32, i32
  }
  func.func @transform_7(%arg0: i32) -> (i32, i32) {
    %c0_i32 = arith.constant 0 : i32
    %c0_i32_0 = arith.constant 0 : i32
    return %arg0, %c0_i32 : i32, i32
  }
}

</mosaic_0001>

<llo_original>
// kernel: mlp_forward.1
$region0: #{mlp_forward.1}
  #allocation0 [shape = 'u32[]', space=smem, size = 0x4, offset = 0x4, fixed_abs, tag = 'smem constant byte address 0x4 - core index']
  #allocation1 [shape = 'u32[144,128]{1,0:T(1,128)}', space=vmem, size = 0x12000, scoped, tag = 'internal scratch']
  %s0 = inlined_call_operand.hbm [shape: f32[24,32], index: 0, kind: input, shape index: {}]
  %s1 = inlined_call_operand.vmem [shape: bf16[32,128], index: 1, kind: input, shape index: {}]
  %s2 = inlined_call_operand.vmem [shape: f32[1,128], index: 2, kind: input, shape index: {}]
  %s3 = inlined_call_operand.vmem [shape: bf16[128,128], index: 3, kind: input, shape index: {}]
  %s4 = inlined_call_operand.vmem [shape: f32[1,128], index: 4, kind: input, shape index: {}]
  %s5 = inlined_call_operand.vmem [shape: bf16[128,16], index: 5, kind: input, shape index: {}]
  %s6 = inlined_call_operand.vmem [shape: f32[1,16], index: 6, kind: input, shape index: {}]
  %s7 = inlined_call_operand.vmem [shape: f32[24,16], index: 7, kind: output, shape index: {}]
  %s8 = sld [smem:[#allocation0]]
  $region65: #{mlp_forward.1} parent=0
    _
  %s10 = ssub.s32 1, %s8
  %s11 = scalar_select 0, %s10, %s8
  $region1: #{mlp_forward.1} parent=0
    #allocation2 [shape = 'u8[8192]{0}', space=vmem, size = 0x2000, scoped, tag = 'input window, operand 0']
    #allocation3 [shape = 's32[2]{0}', space=sflag, size = 0x8, scoped, tag = 'scoped memory for mlp_forward.1']
    %12 = vsyncpa [#allocation3], 0
    %s13 = scalar_lea.sflag [#allocation3], 1
    %14 = vsyncpa %s13, 0
    loop: start=0, step=1, limit=5
    $region2: #{mlp_forward.1} parent=1 // loop_pre_header
      _
    $region3: #{mlp_forward.1} parent=1 // loop_header
      %s16 = sphi 0, %s20
      %p17 = scmp.ge.s32.totalorder %s16, 5
      %s26 = sphi 0, %s28
      %s29 = sphi 0, %s26
      %s30 = sphi 0, %s29
      %s46 = sphi 0, %s30
      %s50 = sphi 0, %s50
      %s52 = sphi 0, %s50
      %s53 = sphi 0, %s52
      %s67 = sphi 0, %s53
      %s71 = sphi 0, %s71
      %s73 = sphi 0, %s71
      %s74 = sphi 0, %s73
      %s88 = sphi 0, %s74
      %s92 = sphi 0, %s92
      %s94 = sphi 0, %s92
      %s95 = sphi 0, %s94
      %s109 = sphi 0, %s95
      %s113 = sphi 0, %s113
      %s115 = sphi 0, %s113
      %s116 = sphi 0, %s115
      %s130 = sphi 0, %s116
      %s134 = sphi 0, %s134
      %s136 = sphi 0, %s134
      %s137 = sphi 0, %s136
      %s151 = sphi 0, %s137
      %s155 = sphi 0, %s155
      %s157 = sphi 0, %s155
      %s158 = sphi 0, %s157
      %s172 = sphi 0, %s158
      %s178 = sphi 0, %s180
      %s181 = sphi 0, %s178
      %s182 = sphi 0, %s181
      %s198 = sphi 0, %s182
    $region4: #{mlp_forward.1} parent=1 // loop_header_branch
      %19 = sbr.rel (%p17) target = $region8
    $region5: #{mlp_forward.1} parent=1 // loop_body
      %s21 = ssub.s32 %s16, 1
      %s22 = ssub.s32 %s16, 2
      %s23 = sadd.s32 %s16, 1
      %s24 = ssub.s32 %s16, %s23
      %p25 = scmp.eq.s32.totalorder %s24, 0
      %s27 = sadd.s32 %s26, 1
      %s28 = scalar_select %p25, %s26, %s27
      %p31 = pneg %p25
      %p32 = scmp.eq.s32.totalorder %s16, 2
      %p33 = por %p31, %p32
      %p34 = scmp.ne.s32.totalorder %s26, %s29
      %p35 = scmp.eq.s32.totalorder %s16, 0
      %p36 = por %p34, %p35
      %p37 = scmp.ne.s32.totalorder %s26, %s29
      %p38 = scmp.eq.s32.totalorder %s21, 2
      %p39 = por %p37, %p38
      %p40 = scmp.ne.s32.totalorder %s29, %s30
      %p41 = scmp.eq.s32.totalorder %s21, 0
      %p42 = por %p40, %p41
      %p43 = scmp.ne.s32.totalorder %s29, %s30
      %p44 = scmp.eq.s32.totalorder %s22, 2
      %p45 = por %p43, %p44
      %p47 = scmp.ne.s32.totalorder %s30, %s46
      %p48 = scmp.eq.s32.totalorder %s22, 0
      %p49 = por %p47, %p48
      %s51 = sadd.s32 %s50, 1
      %p54 = scmp.eq.s32.totalorder %s16, 2
      %p55 = scmp.ne.s32.totalorder %s50, %s52
      %p56 = scmp.eq.s32.totalorder %s16, 0
      %p57 = por %p55, %p56
      %p58 = scmp.ne.s32.totalorder %s50, %s52
      %p59 = scmp.eq.s32.totalorder %s21, 2
      %p60 = por %p58, %p59
      %p61 = scmp.ne.s32.totalorder %s52, %s53
      %p62 = scmp.eq.s32.totalorder %s21, 0
      %p63 = por %p61, %p62
      %p64 = scmp.ne.s32.totalorder %s52, %s53
      %p65 = scmp.eq.s32.totalorder %s22, 2
      %p66 = por %p64, %p65
      %p68 = scmp.ne.s32.totalorder %s53, %s67
      %p69 = scmp.eq.s32.totalorder %s22, 0
      %p70 = por %p68, %p69
      %s72 = sadd.s32 %s71, 1
      %p75 = scmp.eq.s32.totalorder %s16, 2
      %p76 = scmp.ne.s32.totalorder %s71, %s73
      %p77 = scmp.eq.s32.totalorder %s16, 0
      %p78 = por %p76, %p77
      %p79 = scmp.ne.s32.totalorder %s71, %s73
      %p80 = scmp.eq.s32.totalorder %s21, 2
      %p81 = por %p79, %p80
      %p82 = scmp.ne.s32.totalorder %s73, %s74
      %p83 = scmp.eq.s32.totalorder %s21, 0
      %p84 = por %p82, %p83
      %p85 = scmp.ne.s32.totalorder %s73, %s74
      %p86 = scmp.eq.s32.totalorder %s22, 2
      %p87 = por %p85, %p86
      %p89 = scmp.ne.s32.totalorder %s74, %s88
      %p90 = scmp.eq.s32.totalorder %s22, 0
      %p91 = por %p89, %p90
      %s93 = sadd.s32 %s92, 1
      %p96 = scmp.eq.s32.totalorder %s16, 2
      %p97 = scmp.ne.s32.totalorder %s92, %s94
      %p98 = scmp.eq.s32.totalorder %s16, 0
      %p99 = por %p97, %p98
      %p100 = scmp.ne.s32.totalorder %s92, %s94
      %p101 = scmp.eq.s32.totalorder %s21, 2
      %p102 = por %p100, %p101
      %p103 = scmp.ne.s32.totalorder %s94, %s95
      %p104 = scmp.eq.s32.totalorder %s21, 0
      %p105 = por %p103, %p104
      %p106 = scmp.ne.s32.totalorder %s94, %s95
      %p107 = scmp.eq.s32.totalorder %s22, 2
      %p108 = por %p106, %p107
      %p110 = scmp.ne.s32.totalorder %s95, %s109
      %p111 = scmp.eq.s32.totalorder %s22, 0
      %p112 = por %p110, %p111
      %s114 = sadd.s32 %s113, 1
      %p117 = scmp.eq.s32.totalorder %s16, 2
      %p118 = scmp.ne.s32.totalorder %s113, %s115
      %p119 = scmp.eq.s32.totalorder %s16, 0
      %p120 = por %p118, %p119
      %p121 = scmp.ne.s32.totalorder %s113, %s115
      %p122 = scmp.eq.s32.totalorder %s21, 2
      %p123 = por %p121, %p122
      %p124 = scmp.ne.s32.totalorder %s115, %s116
      %p125 = scmp.eq.s32.totalorder %s21, 0
      %p126 = por %p124, %p125
      %p127 = scmp.ne.s32.totalorder %s115, %s116
      %p128 = scmp.eq.s32.totalorder %s22, 2
      %p129 = por %p127, %p128
      %p131 = scmp.ne.s32.totalorder %s116, %s130
      %p132 = scmp.eq.s32.totalorder %s22, 0
      %p133 = por %p131, %p132
      %s135 = sadd.s32 %s134, 1
      %p138 = scmp.eq.s32.totalorder %s16, 2
      %p139 = scmp.ne.s32.totalorder %s134, %s136
      %p140 = scmp.eq.s32.totalorder %s16, 0
      %p141 = por %p139, %p140
      %p142 = scmp.ne.s32.totalorder %s134, %s136
      %p143 = scmp.eq.s32.totalorder %s21, 2
      %p144 = por %p142, %p143
      %p145 = scmp.ne.s32.totalorder %s136, %s137
      %p146 = scmp.eq.s32.totalorder %s21, 0
      %p147 = por %p145, %p146
      %p148 = scmp.ne.s32.totalorder %s136, %s137
      %p149 = scmp.eq.s32.totalorder %s22, 2
      %p150 = por %p148, %p149
      %p152 = scmp.ne.s32.totalorder %s137, %s151
      %p153 = scmp.eq.s32.totalorder %s22, 0
      %p154 = por %p152, %p153
      %s156 = sadd.s32 %s155, 1
      %p159 = scmp.eq.s32.totalorder %s16, 2
      %p160 = scmp.ne.s32.totalorder %s155, %s157
      %p161 = scmp.eq.s32.totalorder %s16, 0
      %p162 = por %p160, %p161
      %p163 = scmp.ne.s32.totalorder %s155, %s157
      %p164 = scmp.eq.s32.totalorder %s21, 2
      %p165 = por %p163, %p164
      %p166 = scmp.ne.s32.totalorder %s157, %s158
      %p167 = scmp.eq.s32.totalorder %s21, 0
      %p168 = por %p166, %p167
      %p169 = scmp.ne.s32.totalorder %s157, %s158
      %p170 = scmp.eq.s32.totalorder %s22, 2
      %p171 = por %p169, %p170
      %p173 = scmp.ne.s32.totalorder %s158, %s172
      %p174 = scmp.eq.s32.totalorder %s22, 0
      %p175 = por %p173, %p174
      %s176 = ssub.s32 %s16, %s23
      %p177 = scmp.eq.s32.totalorder %s176, 0
      %s179 = sadd.s32 %s178, 1
      %s180 = scalar_select %p177, %s178, %s179
      %p183 = pneg %p177
      %p184 = scmp.eq.s32.totalorder %s16, 2
      %p185 = por %p183, %p184
      %p186 = scmp.ne.s32.totalorder %s178, %s181
      %p187 = scmp.eq.s32.totalorder %s16, 0
      %p188 = por %p186, %p187
      %p189 = scmp.ne.s32.totalorder %s178, %s181
      %p190 = scmp.eq.s32.totalorder %s21, 2
      %p191 = por %p189, %p190
      %p192 = scmp.ne.s32.totalorder %s181, %s182
      %p193 = scmp.eq.s32.totalorder %s21, 0
      %p194 = por %p192, %p193
      %p195 = scmp.ne.s32.totalorder %s181, %s182
      %p196 = scmp.eq.s32.totalorder %s22, 2
      %p197 = por %p195, %p196
      %p199 = scmp.ne.s32.totalorder %s182, %s198
      %p200 = scmp.eq.s32.totalorder %s22, 0
      %p201 = por %p199, %p200
      %p202 = scmp.le.s32.totalorder 1, %s16
      %p203 = scmp.lt.s32.totalorder %s16, 4
      %p204 = pnand %p202, %p203
      %p205 = pneg %p204
      // Predicated region
      $region9: #{mlp_forward.1} parent=5 // pred_check
        _
      $region10: #{mlp_forward.1} parent=5 // pred_check_branch
        %207 = sbr.rel (%p204) target = $region12
      $region11: #{mlp_forward.1} parent=5 // pred_region
        %s208 = ssub.s32 %s16, 1
        // Predicated region
        $region13: #{mlp_forward.1} parent=11 // pred_check
          %p209 = pneg %p63
        $region14: #{mlp_forward.1} parent=11 // pred_check_branch
          %211 = sbr.rel (%p209) target = $region16
        $region15: #{mlp_forward.1} parent=11 // pred_region
          _
        $region16: #{mlp_forward.1} parent=11 // pred_fallthru
          _
        // Predicated region
        $region17: #{mlp_forward.1} parent=11 // pred_check
          %p212 = pneg %p84
        $region18: #{mlp_forward.1} parent=11 // pred_check_branch
          %214 = sbr.rel (%p212) target = $region20
        $region19: #{mlp_forward.1} parent=11 // pred_region
          _
        $region20: #{mlp_forward.1} parent=11 // pred_fallthru
          _
        // Predicated region
        $region21: #{mlp_forward.1} parent=11 // pred_check
          %p215 = pneg %p105
        $region22: #{mlp_forward.1} parent=11 // pred_check_branch
          %217 = sbr.rel (%p215) target = $region24
        $region23: #{mlp_forward.1} parent=11 // pred_region
          _
        $region24: #{mlp_forward.1} parent=11 // pred_fallthru
          _
        // Predicated region
        $region25: #{mlp_forward.1} parent=11 // pred_check
          %p218 = pneg %p126
        $region26: #{mlp_forward.1} parent=11 // pred_check_branch
          %220 = sbr.rel (%p218) target = $region28
        $region27: #{mlp_forward.1} parent=11 // pred_region
          _
        $region28: #{mlp_forward.1} parent=11 // pred_fallthru
          _
        // Predicated region
        $region29: #{mlp_forward.1} parent=11 // pred_check
          %p221 = pneg %p147
        $region30: #{mlp_forward.1} parent=11 // pred_check_branch
          %223 = sbr.rel (%p221) target = $region32
        $region31: #{mlp_forward.1} parent=11 // pred_region
          _
        $region32: #{mlp_forward.1} parent=11 // pred_fallthru
          _
        // Predicated region
        $region33: #{mlp_forward.1} parent=11 // pred_check
          %p224 = pneg %p168
        $region34: #{mlp_forward.1} parent=11 // pred_check_branch
          %226 = sbr.rel (%p224) target = $region36
        $region35: #{mlp_forward.1} parent=11 // pred_region
          _
        $region36: #{mlp_forward.1} parent=11 // pred_fallthru
          _
      $region12: #{mlp_forward.1} parent=5 // pred_fallthru
        _
      %p227 = scmp.lt.s32.totalorder %s16, 3
      // Predicated region
      $region37: #{mlp_forward.1} parent=5 // pred_check
        %p228 = pneg %p227
      $region38: #{mlp_forward.1} parent=5 // pred_check_branch
        %230 = sbr.rel (%p228) target = $region40
      $region39: #{mlp_forward.1} parent=5 // pred_region
        // Predicated region
        $region41: #{mlp_forward.1} parent=39 // pred_check
          %p231 = pneg %p36
        $region42: #{mlp_forward.1} parent=39 // pred_check_branch
          %233 = sbr.rel (%p231) target = $region44
        $region43: #{mlp_forward.1} parent=39 // pred_region
          %s234 = sand.u32 %s26, 1
          %s235 = scalar_lea.sflag [#allocation3], %s234
          %s236 = sand.u32 %s26, 1
          %s237 = smul.addr %s236, 8
          %s238 = scalar_lea.vmem [#allocation2], %s237
          %s240 = ssub.s32 128, 128
          %241 = vsyncadd %s235, %s240
          %s242 = smul.addr %s16, 128
          %s243 = scalar_lea.hbm %s0, %s242
          %s245 = sshll.u32 %s238, 4
          %s246 = int_to_ptr.vmem [resolvable:$true] %s245
          %248 = dma.hbm_to_vmem [thread:$0]  %s243, 128, %s246, %s235
        $region44: #{mlp_forward.1} parent=39 // pred_fallthru
          _
      $region40: #{mlp_forward.1} parent=5 // pred_fallthru
        _
      %p249 = scmp.le.s32.totalorder 1, %s16
      %p250 = scmp.lt.s32.totalorder %s16, 4
      %p251 = pnand %p249, %p250
      %p252 = pneg %p251
      // Predicated region
      $region45: #{mlp_forward.1} parent=5 // pred_check
        _
      $region46: #{mlp_forward.1} parent=5 // pred_check_branch
        %254 = sbr.rel (%p251) target = $region48
      $region47: #{mlp_forward.1} parent=5 // pred_region
        %s255 = ssub.s32 %s16, 1
        %s256 = sand.u32 %s29, 1
        %s257 = scalar_lea.sflag [#allocation3], %s256
        %s258 = sand.u32 %s29, 1
        %s259 = smul.addr %s258, 8
        %s260 = scalar_lea.vmem [#allocation2], %s259
        // Predicated region
        $region49: #{mlp_forward.1} parent=47 // pred_check
          %p261 = pneg %p42
        $region50: #{mlp_forward.1} parent=47 // pred_check_branch
          %263 = sbr.rel (%p261) target = $region52
        $region51: #{mlp_forward.1} parent=47 // pred_region
          %264 = dma.done %s257, 128
        $region52: #{mlp_forward.1} parent=47 // pred_fallthru
          _
        %s265 = sand.u32 %s29, 1
        %s266 = scalar_lea.sflag [#allocation3], %s265
        %s267 = sand.u32 %s29, 1
        %s268 = smul.addr %s267, 8
        %s269 = scalar_lea.vmem [#allocation2], %s268
        %p270 = pneg %p42
        %p271 = pneg %p39
        %p272 = pneg %p63
        %p273 = pneg %p60
        %p274 = pneg %p84
        %p275 = pneg %p81
        %p276 = pneg %p105
        %p277 = pneg %p102
        %p278 = pneg %p126
        %p279 = pneg %p123
        %p280 = pneg %p147
        %p281 = pneg %p144
        %p282 = pneg %p168
        %p283 = pneg %p165
        %p284 = pneg %p194
        %p285 = pneg %p191
        %p286 = scmp.lt.s32.totalorder %s21, 2
        %s287 = scalar_select %p286, %s21, 2
        %s288 = smul.addr %s287, 8
        %s289 = scalar_lea.vmem %s7, %s288
        %p290 = scmp.lt.s32.totalorder %s21, 2
        %s291 = scalar_select %p290, %s21, 2
        %s292 = smul.addr %s291, 8
        %s293 = scalar_lea.vmem %s7, %s292
        %v295 = vld [vmem:[%s260] sm:$0xff]
        %v296 = vpack.c.bf16 %v295, %v295
        %v297 = vld [vmem:[%s1] sm:$0xf]
        %v298 = vld [vmem:[%s1 + $0x4] sm:$0xf]
        %v299 = vld [vmem:[%s1 + $0x8] sm:$0xf]
        %v300 = vld [vmem:[%s1 + $0xc] sm:$0xf]
        %v301 = vld [vmem:[%s2] sm:$0x1]
        %v303 = vlaneseq
        %v304 = vshrl.u32 %v303, 7
        %v305 = vsub.s32 0, %v304
        %v306 = vrot.slane %v301, %v305
        %v312 = vunpack.c.l.b16 %v297
        %v313 = vunpack.c.l.b16 %v298
        %v314 = vunpack.c.l.b16 %v299
        %v315 = vunpack.c.l.b16 %v300
        %v316 = vpack.c.b16 %v313, %v312
        %v317 = vpack.c.b16 %v315, %v314
        %vm320 = vcmask 261120
        %v322 = vsel %vm320, %v296, 0
        %324 = vmatprep.subr.bf16.mxu0 0
        %325 = vmatpush1.bf16.msra.mxu0 %v316
        %326 = vmatprep.subr.bf16.mxu0 0
        %327 = vmatpush1.bf16.msra.mxu0 %v317
        %328 = vmatprep.subr.bf16.mxu0 0
        %329 = vmatpush1.bf16.msra.mxu0 0
        %330 = vmatprep.subr.bf16.mxu0 0
        %331 = vmatpush1.bf16.msra.mxu0 0
        %332 = vmatprep.subr.bf16.mxu0 0
        %333 = vmatpush1.bf16.msra.mxu0 0
        %334 = vmatprep.subr.bf16.mxu0 0
        %335 = vmatpush1.bf16.msra.mxu0 0
        %336 = vmatprep.subr.bf16.mxu0 0
        %337 = vmatpush1.bf16.msra.mxu0 0
        %338 = vmatprep.subr.bf16.mxu0 0
        %339 = vmatpush1.bf16.msra.mxu0 0
        %340 = vmatprep.subr.bf16.mxu0 0
        %341 = vmatpush1.bf16.msra.mxu0 0
        %342 = vmatprep.subr.bf16.mxu0 0
        %343 = vmatpush1.bf16.msra.mxu0 0
        %344 = vmatprep.subr.bf16.mxu0 0
        %345 = vmatpush1.bf16.msra.mxu0 0
        %346 = vmatprep.subr.bf16.mxu0 0
        %347 = vmatpush1.bf16.msra.mxu0 0
        %348 = vmatprep.subr.bf16.mxu0 0
        %349 = vmatpush1.bf16.msra.mxu0 0
        %350 = vmatprep.subr.bf16.mxu0 0
        %351 = vmatpush1.bf16.msra.mxu0 0
        %352 = vmatprep.subr.bf16.mxu0 0
        %353 = vmatpush1.bf16.msra.mxu0 0
        %354 = vmatprep.subr.bf16.mxu0 0
        %355 = vmatpush1.bf16.msra.mxu0 0
        %356 = vmatprep.mubr.bf16.mxu0 0
        %357 = vmatmul.mubr.bf16.gmra.mrb[0].mxu0 %v322
        %v358 = vpop.f32.mrb[0].mxu0
        %v359 = vadd.f32 %v306, %v358
        %v360 = vpop.f32.mrb[0].mxu0
        %v361 = vpop.f32.mrb[0].mxu0
        %v362 = vpop.f32.mrb[0].mxu0
        %363 = vdwg.mxu0
        %v364 = vmax.f32 %v359, 0.0
        %v365 = vpack.c.bf16 %v364, %v364
        %v366 = vld [vmem:[%s3] sm:$0xf]
        %v367 = vld [vmem:[%s3 + $0x4] sm:$0xf]
        %v368 = vld [vmem:[%s3 + $0x8] sm:$0xf]
        %v369 = vld [vmem:[%s3 + $0xc] sm:$0xf]
        %v370 = vld [vmem:[%s3 + $0x10] sm:$0xf]
        %v371 = vld [vmem:[%s3 + $0x14] sm:$0xf]
        %v372 = vld [vmem:[%s3 + $0x18] sm:$0xf]
        %v373 = vld [vmem:[%s3 + $0x1c] sm:$0xf]
        %v374 = vld [vmem:[%s3 + $0x20] sm:$0xf]
        %v375 = vld [vmem:[%s3 + $0x24] sm:$0xf]
        %v376 = vld [vmem:[%s3 + $0x28] sm:$0xf]
        %v377 = vld [vmem:[%s3 + $0x2c] sm:$0xf]
        %v378 = vld [vmem:[%s3 + $0x30] sm:$0xf]
        %v379 = vld [vmem:[%s3 + $0x34] sm:$0xf]
        %v380 = vld [vmem:[%s3 + $0x38] sm:$0xf]
        %v381 = vld [vmem:[%s3 + $0x3c] sm:$0xf]
        %v382 = vld [vmem:[%s4] sm:$0x1]
        %v384 = vlaneseq
        %v385 = vshrl.u32 %v384, 7
        %v386 = vsub.s32 0, %v385
        %v387 = vrot.slane %v382, %v386
        %v405 = vunpack.c.l.b16 %v366
        %v406 = vunpack.c.l.b16 %v367
        %v407 = vunpack.c.l.b16 %v368
        %v408 = vunpack.c.l.b16 %v369
        %v409 = vunpack.c.l.b16 %v370
        %v410 = vunpack.c.l.b16 %v371
        %v411 = vunpack.c.l.b16 %v372
        %v412 = vunpack.c.l.b16 %v373
        %v413 = vunpack.c.l.b16 %v374
        %v414 = vunpack.c.l.b16 %v375
        %v415 = vunpack.c.l.b16 %v376
        %v416 = vunpack.c.l.b16 %v377
        %v417 = vunpack.c.l.b16 %v378
        %v418 = vunpack.c.l.b16 %v379
        %v419 = vunpack.c.l.b16 %v380
        %v420 = vunpack.c.l.b16 %v381
        %v421 = vpack.c.b16 %v406, %v405
        %v422 = vpack.c.b16 %v408, %v407
        %v423 = vpack.c.b16 %v410, %v409
        %v424 = vpack.c.b16 %v412, %v411
        %v425 = vpack.c.b16 %v414, %v413
        %v426 = vpack.c.b16 %v416, %v415
        %v427 = vpack.c.b16 %v418, %v417
        %v428 = vpack.c.b16 %v420, %v419
        %437 = vmatprep.subr.bf16.mxu0 0
        %438 = vmatpush1.bf16.msra.mxu0 %v421
        %439 = vmatprep.subr.bf16.mxu0 0
        %440 = vmatpush1.bf16.msra.mxu0 %v422
        %441 = vmatprep.subr.bf16.mxu0 0
        %442 = vmatpush1.bf16.msra.mxu0 %v423
        %443 = vmatprep.subr.bf16.mxu0 0
        %444 = vmatpush1.bf16.msra.mxu0 %v424
        %445 = vmatprep.subr.bf16.mxu0 0
        %446 = vmatpush1.bf16.msra.mxu0 %v425
        %447 = vmatprep.subr.bf16.mxu0 0
        %448 = vmatpush1.bf16.msra.mxu0 %v426
        %449 = vmatprep.subr.bf16.mxu0 0
        %450 = vmatpush1.bf16.msra.mxu0 %v427
        %451 = vmatprep.subr.bf16.mxu0 0
        %452 = vmatpush1.bf16.msra.mxu0 %v428
        %453 = vmatprep.subr.bf16.mxu0 0
        %454 = vmatpush1.bf16.msra.mxu0 0
        %455 = vmatprep.subr.bf16.mxu0 0
        %456 = vmatpush1.bf16.msra.mxu0 0
        %457 = vmatprep.subr.bf16.mxu0 0
        %458 = vmatpush1.bf16.msra.mxu0 0
        %459 = vmatprep.subr.bf16.mxu0 0
        %460 = vmatpush1.bf16.msra.mxu0 0
        %461 = vmatprep.subr.bf16.mxu0 0
        %462 = vmatpush1.bf16.msra.mxu0 0
        %463 = vmatprep.subr.bf16.mxu0 0
        %464 = vmatpush1.bf16.msra.mxu0 0
        %465 = vmatprep.subr.bf16.mxu0 0
        %466 = vmatpush1.bf16.msra.mxu0 0
        %467 = vmatprep.subr.bf16.mxu0 0
        %468 = vmatpush1.bf16.msra.mxu0 0
        %469 = vmatprep.mubr.bf16.mxu0 0
        %470 = vmatmul.mubr.bf16.gmra.mrb[0].mxu0 %v365
        %v471 = vpop.f32.mrb[0].mxu0
        %v472 = vadd.f32 %v387, %v471
        %v473 = vpop.f32.mrb[0].mxu0
        %v474 = vpop.f32.mrb[0].mxu0
        %v475 = vpop.f32.mrb[0].mxu0
        %476 = vdwg.mxu0
        %v477 = vmax.f32 %v472, 0.0
        %v478 = vpack.c.bf16 %v477, %v477
        %v479 = vld [vmem:[%s5] sm:$0xf]
        %v480 = vld [vmem:[%s5 + $0x4] sm:$0xf]
        %v481 = vld [vmem:[%s5 + $0x8] sm:$0xf]
        %v482 = vld [vmem:[%s5 + $0xc] sm:$0xf]
        %v483 = vld [vmem:[%s5 + $0x10] sm:$0xf]
        %v484 = vld [vmem:[%s5 + $0x14] sm:$0xf]
        %v485 = vld [vmem:[%s5 + $0x18] sm:$0xf]
        %v486 = vld [vmem:[%s5 + $0x1c] sm:$0xf]
        %v487 = vld [vmem:[%s5 + $0x20] sm:$0xf]
        %v488 = vld [vmem:[%s5 + $0x24] sm:$0xf]
        %v489 = vld [vmem:[%s5 + $0x28] sm:$0xf]
        %v490 = vld [vmem:[%s5 + $0x2c] sm:$0xf]
        %v491 = vld [vmem:[%s5 + $0x30] sm:$0xf]
        %v492 = vld [vmem:[%s5 + $0x34] sm:$0xf]
        %v493 = vld [vmem:[%s5 + $0x38] sm:$0xf]
        %v494 = vld [vmem:[%s5 + $0x3c] sm:$0xf]
        %v495 = vld [vmem:[%s6] sm:$0x1]
        %v497 = vlaneseq
        %v498 = vshrl.u32 %v497, 7
        %v499 = vsub.s32 0, %v498
        %v500 = vrot.slane %v495, %v499
        %v518 = vunpack.c.l.b16 %v479
        %v519 = vunpack.c.l.b16 %v480
        %v520 = vunpack.c.l.b16 %v481
        %v521 = vunpack.c.l.b16 %v482
        %v522 = vunpack.c.l.b16 %v483
        %v523 = vunpack.c.l.b16 %v484
        %v524 = vunpack.c.l.b16 %v485
        %v525 = vunpack.c.l.b16 %v486
        %v526 = vunpack.c.l.b16 %v487
        %v527 = vunpack.c.l.b16 %v488
        %v528 = vunpack.c.l.b16 %v489
        %v529 = vunpack.c.l.b16 %v490
        %v530 = vunpack.c.l.b16 %v491
        %v531 = vunpack.c.l.b16 %v492
        %v532 = vunpack.c.l.b16 %v493
        %v533 = vunpack.c.l.b16 %v494
        %v534 = vpack.c.b16 %v519, %v518
        %v535 = vpack.c.b16 %v521, %v520
        %v536 = vpack.c.b16 %v523, %v522
        %v537 = vpack.c.b16 %v525, %v524
        %v538 = vpack.c.b16 %v527, %v526
        %v539 = vpack.c.b16 %v529, %v528
        %v540 = vpack.c.b16 %v531, %v530
        %v541 = vpack.c.b16 %v533, %v532
        %550 = vmatprep.subr.bf16.mxu0 0
        %551 = vmatpush1.bf16.msra.mxu0 %v534
        %552 = vmatprep.subr.bf16.mxu0 0
        %553 = vmatpush1.bf16.msra.mxu0 %v535
        %554 = vmatprep.subr.bf16.mxu0 0
        %555 = vmatpush1.bf16.msra.mxu0 %v536
        %556 = vmatprep.subr.bf16.mxu0 0
        %557 = vmatpush1.bf16.msra.mxu0 %v537
        %558 = vmatprep.subr.bf16.mxu0 0
        %559 = vmatpush1.bf16.msra.mxu0 %v538
        %560 = vmatprep.subr.bf16.mxu0 0
        %561 = vmatpush1.bf16.msra.mxu0 %v539
        %562 = vmatprep.subr.bf16.mxu0 0
        %563 = vmatpush1.bf16.msra.mxu0 %v540
        %564 = vmatprep.subr.bf16.mxu0 0
        %565 = vmatpush1.bf16.msra.mxu0 %v541
        %566 = vmatprep.subr.bf16.mxu0 0
        %567 = vmatpush1.bf16.msra.mxu0 0
        %568 = vmatprep.subr.bf16.mxu0 0
        %569 = vmatpush1.bf16.msra.mxu0 0
        %570 = vmatprep.subr.bf16.mxu0 0
        %571 = vmatpush1.bf16.msra.mxu0 0
        %572 = vmatprep.subr.bf16.mxu0 0
        %573 = vmatpush1.bf16.msra.mxu0 0
        %574 = vmatprep.subr.bf16.mxu0 0
        %575 = vmatpush1.bf16.msra.mxu0 0
        %576 = vmatprep.subr.bf16.mxu0 0
        %577 = vmatpush1.bf16.msra.mxu0 0
        %578 = vmatprep.subr.bf16.mxu0 0
        %579 = vmatpush1.bf16.msra.mxu0 0
        %580 = vmatprep.subr.bf16.mxu0 0
        %581 = vmatpush1.bf16.msra.mxu0 0
        %582 = vmatprep.mubr.bf16.mxu0 0
        %583 = vmatmul.mubr.bf16.gmra.mrb[0].mxu0 %v478
        %v584 = vpop.f32.mrb[0].mxu0
        %v585 = vadd.f32 %v500, %v584
        %v586 = vpop.f32.mrb[0].mxu0
        %v587 = vpop.f32.mrb[0].mxu0
        %v588 = vpop.f32.mrb[0].mxu0
        %589 = vdwg.mxu0
        %v590 = vmax.f32 %v585, 0.0
        %vm591 = vcmask 130048
        %592 = vst.msk [vmem:[%s293] sm:$0xff] %vm591, %v590
        %p593 = scmp.lt.s32.totalorder %s21, 2
        %s594 = scalar_select %p593, %s21, 2
        %s595 = smul.addr %s594, 8
        %s596 = scalar_lea.vmem %s7, %s595
        // Predicated region
        $region53: #{mlp_forward.1} parent=47 // pred_check
          %p597 = pneg %p191
        $region54: #{mlp_forward.1} parent=47 // pred_check_branch
          %599 = sbr.rel (%p597) target = $region56
        $region55: #{mlp_forward.1} parent=47 // pred_region
          _
        $region56: #{mlp_forward.1} parent=47 // pred_fallthru
          _
      $region48: #{mlp_forward.1} parent=5 // pred_fallthru
        _
      %p600 = scmp.le.s32.totalorder 2, %s16
      // Predicated region
      $region57: #{mlp_forward.1} parent=5 // pred_check
        %p601 = pneg %p600
      $region58: #{mlp_forward.1} parent=5 // pred_check_branch
        %603 = sbr.rel (%p601) target = $region60
      $region59: #{mlp_forward.1} parent=5 // pred_region
        %s604 = ssub.s32 %s16, 2
        // Predicated region
        $region61: #{mlp_forward.1} parent=59 // pred_check
          %p605 = pneg %p197
        $region62: #{mlp_forward.1} parent=59 // pred_check_branch
          %607 = sbr.rel (%p605) target = $region64
        $region63: #{mlp_forward.1} parent=59 // pred_region
          %p608 = scmp.lt.s32.totalorder %s22, 2
          %s609 = scalar_select %p608, %s22, 2
          %s610 = smul.addr %s609, 8
          %s611 = scalar_lea.vmem %s7, %s610
        $region64: #{mlp_forward.1} parent=59 // pred_fallthru
          _
      $region60: #{mlp_forward.1} parent=5 // pred_fallthru
        _
    $region6: #{mlp_forward.1} parent=1 // loop_footer
      %s20 = sadd.s32 1, %s16
    $region7: #{mlp_forward.1} parent=1 // loop_footer_branch
      %15 = sbr.rel target = $region3
    $region8: #{mlp_forward.1} parent=1 // loop_exit
      _
    %612 = vsyncpa [#allocation3], 1
    %s613 = scalar_lea.sflag [#allocation3], 1
    %614 = vsyncpa %s613, 1

</llo_original>
